<compile_context>
chip_gen: v5e
topology: v5e:2x2
jax: 0.10.0
libtpu: 0.0.40
codegen_flags: <defaults>
</compile_context>

<pallas_src>
import functools

import jax
import jax.numpy as jnp
from jax import lax
from jax.experimental import pallas as pl
from jax.experimental.pallas import tpu as pltpu


def _round_up(x, m):
    return ((x + m - 1) // m) * m


def _gated_abmil_kernel(x_ref, wvu_ref, bvu_ref, wwt_ref, out_ref,
                        m_ref, l_ref, acc_ref, *, seq_len, seq_tile,
                        hidden_pad, needs_mask, bf16_act):
    s_idx = pl.program_id(1)

    @pl.when(s_idx == 0)
    def _init():
        m_ref[...] = jnp.full_like(m_ref, -1e30)
        l_ref[...] = jnp.zeros_like(l_ref)
        acc_ref[...] = jnp.zeros_like(acc_ref)

    x = x_ref[0]                                        # (TS, D_pad) bf16

    # Fused gating projections: one bf16 MXU pass over x, f32 accumulation.
    vu = jnp.dot(x, wvu_ref[...],
                 preferred_element_type=jnp.float32) + bvu_ref[...]  # (TS, 2H)
    if bf16_act:
        vu = vu.astype(jnp.bfloat16)                    # bf16 EUP on v6e/v7x
    v = jnp.tanh(vu[:, :hidden_pad])
    u = jax.nn.sigmoid(vu[:, hidden_pad:])
    h = (v * u).astype(jnp.bfloat16)                    # (TS, H_pad)

    # Scores directly in lane-dense (NH, TS) layout; bw is dropped (softmax
    # over S is invariant to a per-head constant shift).
    scores = lax.dot_general(
        wwt_ref[...], h, (((1,), (1,)), ((), ())),
        preferred_element_type=jnp.float32)             # (NH, TS)

    if needs_mask:
        col = lax.broadcasted_iota(jnp.int32, scores.shape, 1) + s_idx * seq_tile
        scores = jnp.where(col < seq_len, scores, jnp.float32(-1e30))

    # Online softmax accumulation across sequence tiles.
    m_prev = m_ref[...]                                 # (NH, 1)
    m_new = jnp.maximum(m_prev, jnp.max(scores, axis=-1, keepdims=True))
    alpha = jnp.exp(m_prev - m_new)                     # (NH, 1)
    p = jnp.exp(scores - m_new)                         # (NH, TS)
    l_ref[...] = alpha * l_ref[...] + jnp.sum(p, axis=-1, keepdims=True)
    acc_ref[...] = alpha * acc_ref[...] + jnp.dot(
        p.astype(jnp.bfloat16), x, preferred_element_type=jnp.float32)
    m_ref[...] = m_new

    @pl.when(s_idx == pl.num_programs(1) - 1)
    def _finalize():
        out = acc_ref[...] * pl.reciprocal(l_ref[...], approx=True)  # (NH, D_pad)
        out_ref[0] = out.astype(out_ref.dtype)          # single lane-dense store


def gated_abmil_forward(x, params, *, seq_tile=1024):
    """x: (B, S, D) float32. Returns output_flat: (B, num_heads * D)."""
    B, S, D = x.shape
    wv, bv, wu, bu, ww, bw = params
    del bw  # softmax-shift-invariant; see kernel comment.
    H = wv.shape[1]
    NH = ww.shape[1]

    # TPU-friendly padded shapes (lane = 128, sublane = 8).
    D_pad = _round_up(D, 128)
    H_pad = _round_up(H, 128)
    TS = _round_up(min(seq_tile, _round_up(S, 8)), 8)
    S_pad = _round_up(S, TS)
    needs_mask = (S_pad != S)

    # Cast + pad fused in the wrapper; zero fill keeps padded-row p @ x == 0.
    x_p = x.astype(jnp.bfloat16)
    if S_pad != S or D_pad != D:
        x_p = jnp.pad(x_p, ((0, 0), (0, S_pad - S), (0, D_pad - D)))

    def pad2(a, r, c):
        return jnp.pad(a, ((0, r - a.shape[0]), (0, c - a.shape[1])))

    # Fused (D_pad, 2*H_pad) gating weight, bf16 for full-rate MXU.
    wvu = jnp.concatenate(
        [pad2(wv, D_pad, H_pad), pad2(wu, D_pad, H_pad)], axis=1
    ).astype(jnp.bfloat16)                                   # (D_pad, 2*H_pad)
    bvu = jnp.concatenate(
        [pad2(bv, 1, H_pad), pad2(bu, 1, H_pad)], axis=1
    ).astype(jnp.float32)                                    # (1, 2*H_pad)
    wwt = pad2(ww, H_pad, NH).T.astype(jnp.bfloat16)         # (NH, H_pad)

    # bf16 transcendentals only where the EUP/VPU has a bf16 path (v6e/v7x+).
    try:
        kind = jax.devices()[0].device_kind.lower()
    except Exception:
        kind = ""
    bf16_act = not any(t in kind for t in ("v2", "v3", "v4", "v5"))

    grid = (B, S_pad // TS)

    kernel = functools.partial(
        _gated_abmil_kernel,
        seq_len=S, seq_tile=TS, hidden_pad=H_pad,
        needs_mask=needs_mask, bf16_act=bf16_act)

    # VMEM budget: double-buffered bf16 x tile + single-buffered weights
    # + double-buffered output block + scratch accumulators.
    x_blk = TS * D_pad * 2
    w_bytes = D_pad * (2 * H_pad) * 2 + (2 * H_pad) * 4 + NH * H_pad * 2
    out_blk = NH * D_pad * 4
    scratch_bytes = NH * (D_pad + 2) * 4
    need = 2 * x_blk + w_bytes + 2 * out_blk + scratch_bytes
    try:
        vmem_cap = int(pltpu.get_tpu_info().vmem_capacity_bytes)
    except Exception:
        vmem_cap = 64 << 20
    target = (48 << 20) if vmem_cap <= (64 << 20) else (100 << 20)
    vmem_limit = int(min(target, max(32 << 20, 2 * need + (2 << 20))))

    const_buf = pl.Buffered(1)   # constant-index blocks: no double buffering

    out = pl.pallas_call(
        kernel,
        out_shape=jax.ShapeDtypeStruct((B, NH, D_pad), x.dtype),
        grid_spec=pltpu.PrefetchScalarGridSpec(
            num_scalar_prefetch=0,
            grid=grid,
            in_specs=[
                pl.BlockSpec((1, TS, D_pad), lambda b, s: (b, s, 0)),      # x
                pl.BlockSpec((D_pad, 2 * H_pad), lambda b, s: (0, 0),      # Wvu
                             pipeline_mode=const_buf),
                pl.BlockSpec((1, 2 * H_pad), lambda b, s: (0, 0),          # bvu
                             pipeline_mode=const_buf),
                pl.BlockSpec((NH, H_pad), lambda b, s: (0, 0),             # Ww^T
                             pipeline_mode=const_buf),
            ],
            out_specs=pl.BlockSpec((1, NH, D_pad), lambda b, s: (b, 0, 0)),
            scratch_shapes=[
                pltpu.VMEM((NH, 1), jnp.float32),       # running max m
                pltpu.VMEM((NH, 1), jnp.float32),       # running denom l
                pltpu.VMEM((NH, D_pad), jnp.float32),   # running attn^T @ x
            ],
        ),
        compiler_params=pltpu.CompilerParams(
            dimension_semantics=("parallel", "arbitrary"),
            vmem_limit_bytes=vmem_limit),
    )(x_p, wvu, bvu, wwt)

    if D_pad != D:
        out = out[:, :, :D]
    # classifier = Identity -> (classifier(output_flat), output_flat) equal.
    return out.reshape(B, NH * D)


def init_params(key, emb_dim, hidden_dim, num_heads):
    """PyTorch-Linear-style init (uniform +/- 1/sqrt(fan_in)).

    Weights stored pre-transposed as (in, out) so the kernel does x @ W.
    """
    ks = jax.random.split(key, 6)

    def lin(kw, kb, fan_in, fan_out):
        bound = 1.0 / jnp.sqrt(fan_in)
        w = jax.random.uniform(kw, (fan_in, fan_out), jnp.float32, -bound, bound)
        b = jax.random.uniform(kb, (1, fan_out), jnp.float32, -bound, bound)
        return w, b

    wv, bv = lin(ks[0], ks[1], emb_dim, hidden_dim)
    wu, bu = lin(ks[2], ks[3], emb_dim, hidden_dim)
    ww, bw = lin(ks[4], ks[5], hidden_dim, num_heads)
    return (wv, bv, wu, bu, ww, bw)


def _reference_forward(x, params):
    wv, bv, wu, bu, ww, bw = params
    v = jnp.tanh(x @ wv + bv)
    u = jax.nn.sigmoid(x @ wu + bu)
    scores = (v * u) @ ww + bw                          # (B, S, NH)
    attn = jax.nn.softmax(scores, axis=1)
    out = jnp.einsum("bsh,bsd->bhd", attn, x)           # (B, NH, D)
    return out.reshape(x.shape[0], -1)


if __name__ == "__main__":
    key = jax.random.PRNGKey(0)

    # Case 1: small shapes, single sequence tile, NH = 1.
    B, S, D, H, NH = 2, 8, 16, 32, 1
    kx, kp, key = jax.random.split(key, 3)
    x = jax.random.normal(kx, (B, S, D), jnp.float32)
    params = init_params(kp, emb_dim=D, hidden_dim=H, num_heads=NH)
    out = jax.block_until_ready(gated_abmil_forward(x, params))
    ref = _reference_forward(x, params)
    assert out.shape == (B, NH * D)
    assert jnp.allclose(out, ref, atol=2.5e-2, rtol=2.5e-2)

    # Case 2: unaligned S/D/H, NH = 2, two sequence tiles (exercises padding,
    # in-kernel row masking and the online-softmax accumulation).
    B2, S2, D2, H2, NH2 = 3, 13, 20, 24, 2
    kx2, kp2 = jax.random.split(key)
    x2 = jax.random.normal(kx2, (B2, S2, D2), jnp.float32)
    params2 = init_params(kp2, emb_dim=D2, hidden_dim=H2, num_heads=NH2)
    out2 = jax.block_until_ready(gated_abmil_forward(x2, params2, seq_tile=8))
    ref2 = _reference_forward(x2, params2)
    assert out2.shape == (B2, NH2 * D2)
    assert jnp.allclose(out2, ref2, atol=2.5e-2, rtol=2.5e-2)

    print("KERNEL_OK")
</pallas_src>

<mosaic_0001>
module attributes {stable_mosaic.version = 11 : i64} {
  func.func @_gated_abmil_kernel(%arg0: i32, %arg1: i32, %arg2: memref<1x8x128xbf16, #tpu.memory_space<vmem>>, %arg3: memref<128x256xbf16, #tpu.memory_space<vmem>>, %arg4: memref<1x256xf32, #tpu.memory_space<vmem>>, %arg5: memref<1x128xbf16, #tpu.memory_space<vmem>>, %arg6: memref<1x1x128xf32, #tpu.memory_space<vmem>>, %arg7: memref<1x1xf32, #tpu.memory_space<vmem>>, %arg8: memref<1x1xf32, #tpu.memory_space<vmem>>, %arg9: memref<1x128xf32, #tpu.memory_space<vmem>>) attributes {dimension_semantics = [#tpu.dimension_semantics<parallel>, #tpu.dimension_semantics<arbitrary>], iteration_bounds = array<i64: 2, 1>, scalar_prefetch = 0 : i64, scratch_operands = 3 : i64, tpu.core_type = #tpu.core_type<tc>, window_params = [{transform_indices = @transform_0, window_bounds = array<i64: 1, 8, 128>}, {pipeline_mode = #tpu.pipeline_mode<synchronous>, transform_indices = @transform_1, window_bounds = array<i64: 128, 256>}, {pipeline_mode = #tpu.pipeline_mode<synchronous>, transform_indices = @transform_2, window_bounds = array<i64: 1, 256>}, {pipeline_mode = #tpu.pipeline_mode<synchronous>, transform_indices = @transform_3, window_bounds = array<i64: 1, 128>}, {transform_indices = @transform_4, window_bounds = array<i64: 1, 1, 128>}]} {
    %c0_i32 = arith.constant 0 : i32
    %0 = arith.cmpi eq, %arg1, %c0_i32 : i32
    %1 = arith.extui %0 : i1 to i32
    %c0_i32_0 = arith.constant 0 : i32
    %2 = arith.cmpi ne, %1, %c0_i32_0 : i32
    scf.if %2 {
      %cst_28 = arith.constant -1.000000e+30 : f32
      %48 = vector.broadcast %cst_28 : f32 to vector<1x1xf32>
      %c0_29 = arith.constant 0 : index
      %c0_30 = arith.constant 0 : index
      %49 = vector.load %arg7[%c0_29, %c0_30] : memref<1x1xf32, #tpu.memory_space<vmem>>, vector<1x1xf32>
      tpu.vector_store %arg7[%c0_29, %c0_30], %48 {strides = array<i32>} : memref<1x1xf32, #tpu.memory_space<vmem>>, vector<1x1xf32>,
      %cst_31 = arith.constant 0.000000e+00 : f32
      %50 = vector.broadcast %cst_31 : f32 to vector<1x1xf32>
      %c0_32 = arith.constant 0 : index
      %c0_33 = arith.constant 0 : index
      %51 = vector.load %arg8[%c0_32, %c0_33] : memref<1x1xf32, #tpu.memory_space<vmem>>, vector<1x1xf32>
      tpu.vector_store %arg8[%c0_32, %c0_33], %50 {strides = array<i32>} : memref<1x1xf32, #tpu.memory_space<vmem>>, vector<1x1xf32>,
      %cst_34 = arith.constant 0.000000e+00 : f32
      %52 = vector.broadcast %cst_34 : f32 to vector<1x128xf32>
      %c0_35 = arith.constant 0 : index
      %c0_36 = arith.constant 0 : index
      %53 = vector.load %arg9[%c0_35, %c0_36] : memref<1x128xf32, #tpu.memory_space<vmem>>, vector<1x128xf32>
      tpu.vector_store %arg9[%c0_35, %c0_36], %52 {strides = array<i32>} : memref<1x128xf32, #tpu.memory_space<vmem>>, vector<1x128xf32>,
    } else {
    }
    %c0 = arith.constant 0 : index
    %c0_1 = arith.constant 0 : index
    %c0_2 = arith.constant 0 : index
    %3 = vector.load %arg2[%c0, %c0_1, %c0_2] : memref<1x8x128xbf16, #tpu.memory_space<vmem>>, vector<1x8x128xbf16>
    %4 = vector.shape_cast %3 : vector<1x8x128xbf16> to vector<8x128xbf16>
    %c0_3 = arith.constant 0 : index
    %c0_4 = arith.constant 0 : index
    %5 = vector.load %arg3[%c0_3, %c0_4] : memref<128x256xbf16, #tpu.memory_space<vmem>>, vector<128x256xbf16>
    %cst = arith.constant dense<0.000000e+00> : vector<8x256xf32>
    %6 = tpu.matmul %4, %5, %cst {dimension_numbers = #tpu.dot_dimension_numbers<[1], [0], [0], [1], [0, 0, 1, 1], [], []>} : vector<8x128xbf16>, vector<128x256xbf16>, vector<8x256xf32> -> vector<8x256xf32>
    %c0_5 = arith.constant 0 : index
    %c0_6 = arith.constant 0 : index
    %7 = vector.load %arg4[%c0_5, %c0_6] : memref<1x256xf32, #tpu.memory_space<vmem>>, vector<1x256xf32>
    %8 = vector.broadcast %7 : vector<1x256xf32> to vector<8x256xf32>
    %9 = arith.addf %6, %8 : vector<8x256xf32>
    %10 = arith.truncf %9 : vector<8x256xf32> to vector<8x256xbf16>
    %11 = vector.extract_strided_slice %10 {offsets = [0, 0], sizes = [8, 128], strides = [1, 1]} : vector<8x256xbf16> to vector<8x128xbf16>
    %12 = math.tanh %11 : vector<8x128xbf16>
    %13 = vector.extract_strided_slice %10 {offsets = [0, 128], sizes = [8, 128], strides = [1, 1]} : vector<8x256xbf16> to vector<8x128xbf16>
    %14 = arith.negf %13 : vector<8x128xbf16>
    %15 = math.exp %14 : vector<8x128xbf16>
    %cst_7 = arith.constant 1.000000e+00 : bf16
    %16 = vector.broadcast %cst_7 : bf16 to vector<8x128xbf16>
    %17 = arith.addf %16, %15 : vector<8x128xbf16>
    %18 = arith.divf %16, %17 : vector<8x128xbf16>
    %19 = arith.mulf %12, %18 : vector<8x128xbf16>
    %c0_8 = arith.constant 0 : index
    %c0_9 = arith.constant 0 : index
    %20 = vector.load %arg5[%c0_8, %c0_9] : memref<1x128xbf16, #tpu.memory_space<vmem>>, vector<1x128xbf16>
    %cst_10 = arith.constant dense<0.000000e+00> : vector<1x8xf32>
    %21 = tpu.matmul %20, %19, %cst_10 {dimension_numbers = #tpu.dot_dimension_numbers<[1], [1], [0], [0], [0, 0, 1, 0], [], []>} : vector<1x128xbf16>, vector<8x128xbf16>, vector<1x8xf32> -> vector<1x8xf32>
    %c0_11 = arith.constant 0 : index
    %c0_12 = arith.constant 0 : index
    %22 = vector.load %arg7[%c0_11, %c0_12] : memref<1x1xf32, #tpu.memory_space<vmem>>, vector<1x1xf32>
    %cst_13 = arith.constant dense<0xFF800000> : vector<1xf32>
    %23 = vector.multi_reduction <maximumf>, %21, %cst_13 [1] : vector<1x8xf32> to vector<1xf32>
    %24 = vector.shape_cast %23 : vector<1xf32> to vector<1x1xf32>
    %25 = arith.maximumf %22, %24 : vector<1x1xf32>
    %26 = arith.subf %22, %25 : vector<1x1xf32>
    %27 = math.exp %26 : vector<1x1xf32>
    %28 = vector.broadcast %25 : vector<1x1xf32> to vector<1x8xf32>
    %29 = arith.subf %21, %28 : vector<1x8xf32>
    %30 = math.exp %29 : vector<1x8xf32>
    %c0_14 = arith.constant 0 : index
    %c0_15 = arith.constant 0 : index
    %31 = vector.load %arg8[%c0_14, %c0_15] : memref<1x1xf32, #tpu.memory_space<vmem>>, vector<1x1xf32>
    %32 = arith.mulf %27, %31 : vector<1x1xf32>
    %cst_16 = arith.constant dense<0.000000e+00> : vector<1xf32>
    %33 = vector.multi_reduction <add>, %30, %cst_16 [1] : vector<1x8xf32> to vector<1xf32>
    %34 = vector.shape_cast %33 : vector<1xf32> to vector<1x1xf32>
    %35 = arith.addf %32, %34 : vector<1x1xf32>
    %c0_17 = arith.constant 0 : index
    %c0_18 = arith.constant 0 : index
    %36 = vector.load %arg8[%c0_17, %c0_18] : memref<1x1xf32, #tpu.memory_space<vmem>>, vector<1x1xf32>
    tpu.vector_store %arg8[%c0_17, %c0_18], %35 {strides = array<i32>} : memref<1x1xf32, #tpu.memory_space<vmem>>, vector<1x1xf32>,
    %c0_19 = arith.constant 0 : index
    %c0_20 = arith.constant 0 : index
    %37 = vector.load %arg9[%c0_19, %c0_20] : memref<1x128xf32, #tpu.memory_space<vmem>>, vector<1x128xf32>
    %38 = vector.broadcast %27 : vector<1x1xf32> to vector<1x128xf32>
    %39 = arith.mulf %38, %37 : vector<1x128xf32>
    %40 = arith.truncf %30 : vector<1x8xf32> to vector<1x8xbf16>
    %cst_21 = arith.constant dense<0.000000e+00> : vector<1x128xf32>
    %41 = tpu.matmul %40, %4, %cst_21 {dimension_numbers = #tpu.dot_dimension_numbers<[1], [0], [0], [1], [0, 0, 1, 1], [], []>} : vector<1x8xbf16>, vector<8x128xbf16>, vector<1x128xf32> -> vector<1x128xf32>
    %42 = arith.addf %39, %41 : vector<1x128xf32>
    %c0_22 = arith.constant 0 : index
    %c0_23 = arith.constant 0 : index
    %43 = vector.load %arg9[%c0_22, %c0_23] : memref<1x128xf32, #tpu.memory_space<vmem>>, vector<1x128xf32>
    tpu.vector_store %arg9[%c0_22, %c0_23], %42 {strides = array<i32>} : memref<1x128xf32, #tpu.memory_space<vmem>>, vector<1x128xf32>,
    %c0_24 = arith.constant 0 : index
    %c0_25 = arith.constant 0 : index
    %44 = vector.load %arg7[%c0_24, %c0_25] : memref<1x1xf32, #tpu.memory_space<vmem>>, vector<1x1xf32>
    tpu.vector_store %arg7[%c0_24, %c0_25], %25 {strides = array<i32>} : memref<1x1xf32, #tpu.memory_space<vmem>>, vector<1x1xf32>,
    %c0_i32_26 = arith.constant 0 : i32
    %45 = arith.cmpi eq, %arg1, %c0_i32_26 : i32
    %46 = arith.extui %45 : i1 to i32
    %c0_i32_27 = arith.constant 0 : i32
    %47 = arith.cmpi ne, %46, %c0_i32_27 : i32
    scf.if %47 {
      %c0_28 = arith.constant 0 : index
      %c0_29 = arith.constant 0 : index
      %48 = vector.load %arg9[%c0_28, %c0_29] : memref<1x128xf32, #tpu.memory_space<vmem>>, vector<1x128xf32>
      %c0_30 = arith.constant 0 : index
      %c0_31 = arith.constant 0 : index
      %49 = vector.load %arg8[%c0_30, %c0_31] : memref<1x1xf32, #tpu.memory_space<vmem>>, vector<1x1xf32>
      %50 = tpu.reciprocal %49 {approx = true} : vector<1x1xf32> -> vector<1x1xf32>
      %51 = vector.broadcast %50 : vector<1x1xf32> to vector<1x128xf32>
      %52 = arith.mulf %48, %51 : vector<1x128xf32>
      %c0_32 = arith.constant 0 : index
      %c0_33 = arith.constant 0 : index
      %c0_34 = arith.constant 0 : index
      %53 = vector.load %arg6[%c0_32, %c0_33, %c0_34] : memref<1x1x128xf32, #tpu.memory_space<vmem>>, vector<1x1x128xf32>
      %54 = vector.shape_cast %53 : vector<1x1x128xf32> to vector<1x128xf32>
      %55 = vector.shape_cast %52 : vector<1x128xf32> to vector<1x1x128xf32>
      tpu.vector_store %arg6[%c0_32, %c0_33, %c0_34], %55 {strides = array<i32>} : memref<1x1x128xf32, #tpu.memory_space<vmem>>, vector<1x1x128xf32>,
    } else {
    }
    return
  }
  func.func @transform_0(%arg0: i32, %arg1: i32) -> (i32, i32, i32) {
    %c0_i32 = arith.constant 0 : i32
    %c0_i32_0 = arith.constant 0 : i32
    return %arg0, %arg1, %c0_i32 : i32, i32, i32
  }
  func.func @transform_1(%arg0: i32, %arg1: i32) -> (i32, i32) {
    %c0_i32 = arith.constant 0 : i32
    %c0_i32_0 = arith.constant 0 : i32
    %c0_i32_1 = arith.constant 0 : i32
    return %c0_i32, %c0_i32_0 : i32, i32
  }
  func.func @transform_2(%arg0: i32, %arg1: i32) -> (i32, i32) {
    %c0_i32 = arith.constant 0 : i32
    %c0_i32_0 = arith.constant 0 : i32
    %c0_i32_1 = arith.constant 0 : i32
    return %c0_i32, %c0_i32_0 : i32, i32
  }
  func.func @transform_3(%arg0: i32, %arg1: i32) -> (i32, i32) {
    %c0_i32 = arith.constant 0 : i32
    %c0_i32_0 = arith.constant 0 : i32
    %c0_i32_1 = arith.constant 0 : i32
    return %c0_i32, %c0_i32_0 : i32, i32
  }
  func.func @transform_4(%arg0: i32, %arg1: i32) -> (i32, i32, i32) {
    %c0_i32 = arith.constant 0 : i32
    %c0_i32_0 = arith.constant 0 : i32
    %c0_i32_1 = arith.constant 0 : i32
    return %arg0, %c0_i32, %c0_i32_0 : i32, i32, i32
  }
}

</mosaic_0001>

<llo_original>
// kernel: tpu_custom_call.1
$region0: #{tpu_custom_call.1}
  #allocation0 [shape = 'u32[]', space=smem, size = 0x4, offset = 0x4, fixed_abs, tag = 'smem constant byte address 0x4 - core index']
  #allocation1 [shape = 'u32[72,128]{1,0:T(1,128)}', space=vmem, size = 0x9000, scoped, tag = 'internal scratch']
  #allocation2 [shape = 'f32[1,1]{1,0:T(1,128)}', space=vmem, size = 0x200, scoped, tag = 'scratch operand']
  #allocation3 [shape = 'f32[1,1]{1,0:T(1,128)}', space=vmem, size = 0x200, scoped, tag = 'scratch operand']
  #allocation4 [shape = 'f32[1,128]{1,0:T(1,128)}', space=vmem, size = 0x200, scoped, tag = 'scratch operand']
  %s0 = inlined_call_operand.hbm [shape: bf16[2,8,128], index: 0, kind: input, shape index: {}]
  %s1 = inlined_call_operand.hbm [shape: bf16[128,256], index: 1, kind: input, shape index: {}]
  %s2 = inlined_call_operand.hbm [shape: f32[1,256], index: 2, kind: input, shape index: {}]
  %s3 = inlined_call_operand.vmem [shape: bf16[1,128], index: 3, kind: input, shape index: {}]
  %s4 = inlined_call_operand.hbm [shape: f32[2,1,128], index: 4, kind: output, shape index: {}]
  %s5 = sld [smem:[#allocation0]]
  $region69: #{tpu_custom_call.1} parent=0
    _
  %s7 = ssub.s32 1, %s5
  %s8 = scalar_select 0, %s7, %s5
  $region1: #{tpu_custom_call.1} parent=0
    #allocation5 [shape = 'u8[4096]{0}', space=vmem, size = 0x1000, scoped, tag = 'input window, operand 0']
    #allocation6 [shape = 's32[2]{0}', space=sflag, size = 0x8, scoped, tag = 'scoped memory for tpu_custom_call.1']
    #allocation7 [shape = 's32[2]{0}', space=sflag, size = 0x8, scoped, tag = 'scoped memory for tpu_custom_call.1']
    #allocation8 [shape = 'u8[65536]{0}', space=vmem, size = 0x10000, scoped, tag = 'input window, operand 1, single buffered']
    #allocation9 [shape = 's32[1]{0}', space=sflag, size = 0x4, scoped, tag = 'scoped memory for tpu_custom_call.1']
    #allocation10 [shape = 'u8[1024]{0}', space=vmem, size = 0x400, scoped, tag = 'input window, operand 2, single buffered']
    #allocation11 [shape = 'u8[1024]{0}', space=vmem, size = 0x400, scoped, tag = 'output window, operand 0']
    %9 = vsyncpa [#allocation6], 0
    %s10 = scalar_lea.sflag [#allocation6], 1
    %11 = vsyncpa %s10, 0
    %12 = vsyncpa [#allocation9], 0
    %13 = vsyncpa [#allocation7], 0
    %s14 = scalar_lea.sflag [#allocation7], 1
    %15 = vsyncpa %s14, 0
    loop: start=0, step=1, limit=4
    $region2: #{tpu_custom_call.1} parent=1 // loop_pre_header
      _
    $region3: #{tpu_custom_call.1} parent=1 // loop_header
      %s17 = sphi 0, %s21
      %p18 = scmp.ge.s32.totalorder %s17, 4
      %s24 = sphi 0, %s36
      %s25 = sphi 0, %s32
      %s26 = sphi 0, %s24
      %s27 = sphi 0, %s25
      %s28 = sphi 0, %s26
      %s29 = sphi 0, %s27
      %s41 = sphi 0, %s43
      %s44 = sphi 0, %s41
      %s45 = sphi 0, %s44
      %s61 = sphi 0, %s45
      %s65 = sphi 0, %s65
      %s67 = sphi 0, %s65
      %s68 = sphi 0, %s67
      %s82 = sphi 0, %s68
      %s86 = sphi 0, %s86
      %s88 = sphi 0, %s86
      %s89 = sphi 0, %s88
      %s103 = sphi 0, %s89
      %s107 = sphi 0, %s107
      %s109 = sphi 0, %s107
      %s110 = sphi 0, %s109
      %s124 = sphi 0, %s110
      %s130 = sphi 0, %s132
      %s133 = sphi 0, %s130
      %s134 = sphi 0, %s133
      %s150 = sphi 0, %s134
    $region4: #{tpu_custom_call.1} parent=1 // loop_header_branch
      %20 = sbr.rel (%p18) target = $region8
    $region5: #{tpu_custom_call.1} parent=1 // loop_body
      %s22 = ssub.s32 %s17, 1
      %s23 = ssub.s32 %s17, 2
      %s30 = sadd.s32 1, %s25
      %p31 = scmp.ge.s32.totalorder %s30, 1
      %s32 = scalar_select %p31, 0, %s30
      %s33 = sadd.s32 1, %s24
      %s34 = scalar_select %p31, %s33, %s24
      %p35 = scmp.ge.s32.totalorder %s34, 2
      %s36 = scalar_select %p35, 0, %s34
      %s37 = ssub.s32 %s24, %s36
      %s38 = ssub.s32 %s25, %s32
      %s39 = sor.u32 %s37, %s38
      %p40 = scmp.eq.s32.totalorder %s39, 0
      %s42 = sadd.s32 %s41, 1
      %s43 = scalar_select %p40, %s41, %s42
      %p46 = pneg %p40
      %p47 = scmp.eq.s32.totalorder %s17, 1
      %p48 = por %p46, %p47
      %p49 = scmp.ne.s32.totalorder %s41, %s44
      %p50 = scmp.eq.s32.totalorder %s17, 0
      %p51 = por %p49, %p50
      %p52 = scmp.ne.s32.totalorder %s41, %s44
      %p53 = scmp.eq.s32.totalorder %s22, 1
      %p54 = por %p52, %p53
      %p55 = scmp.ne.s32.totalorder %s44, %s45
      %p56 = scmp.eq.s32.totalorder %s22, 0
      %p57 = por %p55, %p56
      %p58 = scmp.ne.s32.totalorder %s44, %s45
      %p59 = scmp.eq.s32.totalorder %s23, 1
      %p60 = por %p58, %p59
      %p62 = scmp.ne.s32.totalorder %s45, %s61
      %p63 = scmp.eq.s32.totalorder %s23, 0
      %p64 = por %p62, %p63
      %s66 = sadd.s32 %s65, 1
      %p69 = scmp.eq.s32.totalorder %s17, 1
      %p70 = scmp.ne.s32.totalorder %s65, %s67
      %p71 = scmp.eq.s32.totalorder %s17, 0
      %p72 = por %p70, %p71
      %p73 = scmp.ne.s32.totalorder %s65, %s67
      %p74 = scmp.eq.s32.totalorder %s22, 1
      %p75 = por %p73, %p74
      %p76 = scmp.ne.s32.totalorder %s67, %s68
      %p77 = scmp.eq.s32.totalorder %s22, 0
      %p78 = por %p76, %p77
      %p79 = scmp.ne.s32.totalorder %s67, %s68
      %p80 = scmp.eq.s32.totalorder %s23, 1
      %p81 = por %p79, %p80
      %p83 = scmp.ne.s32.totalorder %s68, %s82
      %p84 = scmp.eq.s32.totalorder %s23, 0
      %p85 = por %p83, %p84
      %s87 = sadd.s32 %s86, 1
      %p90 = scmp.eq.s32.totalorder %s17, 1
      %p91 = scmp.ne.s32.totalorder %s86, %s88
      %p92 = scmp.eq.s32.totalorder %s17, 0
      %p93 = por %p91, %p92
      %p94 = scmp.ne.s32.totalorder %s86, %s88
      %p95 = scmp.eq.s32.totalorder %s22, 1
      %p96 = por %p94, %p95
      %p97 = scmp.ne.s32.totalorder %s88, %s89
      %p98 = scmp.eq.s32.totalorder %s22, 0
      %p99 = por %p97, %p98
      %p100 = scmp.ne.s32.totalorder %s88, %s89
      %p101 = scmp.eq.s32.totalorder %s23, 1
      %p102 = por %p100, %p101
      %p104 = scmp.ne.s32.totalorder %s89, %s103
      %p105 = scmp.eq.s32.totalorder %s23, 0
      %p106 = por %p104, %p105
      %s108 = sadd.s32 %s107, 1
      %p111 = scmp.eq.s32.totalorder %s17, 1
      %p112 = scmp.ne.s32.totalorder %s107, %s109
      %p113 = scmp.eq.s32.totalorder %s17, 0
      %p114 = por %p112, %p113
      %p115 = scmp.ne.s32.totalorder %s107, %s109
      %p116 = scmp.eq.s32.totalorder %s22, 1
      %p117 = por %p115, %p116
      %p118 = scmp.ne.s32.totalorder %s109, %s110
      %p119 = scmp.eq.s32.totalorder %s22, 0
      %p120 = por %p118, %p119
      %p121 = scmp.ne.s32.totalorder %s109, %s110
      %p122 = scmp.eq.s32.totalorder %s23, 1
      %p123 = por %p121, %p122
      %p125 = scmp.ne.s32.totalorder %s110, %s124
      %p126 = scmp.eq.s32.totalorder %s23, 0
      %p127 = por %p125, %p126
      %s128 = ssub.s32 %s24, %s36
      %p129 = scmp.eq.s32.totalorder %s128, 0
      %s131 = sadd.s32 %s130, 1
      %s132 = scalar_select %p129, %s130, %s131
      %p135 = pneg %p129
      %p136 = scmp.eq.s32.totalorder %s17, 1
      %p137 = por %p135, %p136
      %p138 = scmp.ne.s32.totalorder %s130, %s133
      %p139 = scmp.eq.s32.totalorder %s17, 0
      %p140 = por %p138, %p139
      %p141 = scmp.ne.s32.totalorder %s130, %s133
      %p142 = scmp.eq.s32.totalorder %s22, 1
      %p143 = por %p141, %p142
      %p144 = scmp.ne.s32.totalorder %s133, %s134
      %p145 = scmp.eq.s32.totalorder %s22, 0
      %p146 = por %p144, %p145
      %p147 = scmp.ne.s32.totalorder %s133, %s134
      %p148 = scmp.eq.s32.totalorder %s23, 1
      %p149 = por %p147, %p148
      %p151 = scmp.ne.s32.totalorder %s134, %s150
      %p152 = scmp.eq.s32.totalorder %s23, 0
      %p153 = por %p151, %p152
      %p154 = scmp.le.s32.totalorder 1, %s17
      %p155 = scmp.lt.s32.totalorder %s17, 3
      %p156 = pnand %p154, %p155
      %p157 = pneg %p156
      // Predicated region
      $region9: #{tpu_custom_call.1} parent=5 // pred_check
        _
      $region10: #{tpu_custom_call.1} parent=5 // pred_check_branch
        %159 = sbr.rel (%p156) target = $region12
      $region11: #{tpu_custom_call.1} parent=5 // pred_region
        %s160 = ssub.s32 %s17, 1
        // Predicated region
        $region13: #{tpu_custom_call.1} parent=11 // pred_check
          %p161 = pneg %p78
        $region14: #{tpu_custom_call.1} parent=11 // pred_check_branch
          %163 = sbr.rel (%p161) target = $region16
        $region15: #{tpu_custom_call.1} parent=11 // pred_region
          %165 = vsyncadd [#allocation9], 0
          %s166 = sshll.u32 %s1, 4
          %s167 = int_to_ptr.hbm [resolvable:$true] %s166
          %s168 = sshll.u32 [#allocation8], 4
          %s169 = int_to_ptr.vmem [resolvable:$true] %s168
          %174 = dma.hbm_to_vmem [thread:$0]  %s167, 2048, %s169, [#allocation9], 128, 128, 8
        $region16: #{tpu_custom_call.1} parent=11 // pred_fallthru
          _
        // Predicated region
        $region17: #{tpu_custom_call.1} parent=11 // pred_check
          %p175 = pneg %p99
        $region18: #{tpu_custom_call.1} parent=11 // pred_check_branch
          %177 = sbr.rel (%p175) target = $region20
        $region19: #{tpu_custom_call.1} parent=11 // pred_region
          %179 = vsyncadd [#allocation9], 0
          %s181 = sshll.u32 %s2, 4
          %s182 = int_to_ptr.hbm [resolvable:$true] %s181
          %s183 = sshll.u32 [#allocation10], 4
          %s184 = int_to_ptr.vmem [resolvable:$true] %s183
          %186 = dma.hbm_to_vmem [thread:$0]  %s182, 32, %s184, [#allocation9]
        $region20: #{tpu_custom_call.1} parent=11 // pred_fallthru
          _
        // Predicated region
        $region21: #{tpu_custom_call.1} parent=11 // pred_check
          %p187 = pneg %p120
        $region22: #{tpu_custom_call.1} parent=11 // pred_check_branch
          %189 = sbr.rel (%p187) target = $region24
        $region23: #{tpu_custom_call.1} parent=11 // pred_region
          _
        $region24: #{tpu_custom_call.1} parent=11 // pred_fallthru
          _
      $region12: #{tpu_custom_call.1} parent=5 // pred_fallthru
        _
      %p190 = scmp.lt.s32.totalorder %s17, 2
      // Predicated region
      $region25: #{tpu_custom_call.1} parent=5 // pred_check
        %p191 = pneg %p190
      $region26: #{tpu_custom_call.1} parent=5 // pred_check_branch
        %193 = sbr.rel (%p191) target = $region28
      $region27: #{tpu_custom_call.1} parent=5 // pred_region
        // Predicated region
        $region29: #{tpu_custom_call.1} parent=27 // pred_check
          %p194 = pneg %p51
        $region30: #{tpu_custom_call.1} parent=27 // pred_check_branch
          %196 = sbr.rel (%p194) target = $region32
        $region31: #{tpu_custom_call.1} parent=27 // pred_region
          %s197 = sand.u32 %s41, 1
          %s198 = scalar_lea.sflag [#allocation6], %s197
          %s199 = sand.u32 %s41, 1
          %s200 = smul.addr %s199, 4
          %s201 = scalar_lea.vmem [#allocation5], %s200
          %203 = vsyncadd %s198, 0
          %s204 = sadd.s32 %s25, %s24
          %s205 = smul.addr %s204, 4
          %s206 = scalar_lea.hbm %s0, %s205
          %s208 = sshll.u32 %s206, 4
          %s209 = int_to_ptr.hbm [resolvable:$true] %s208
          %s210 = sshll.u32 %s201, 4
          %s211 = int_to_ptr.vmem [resolvable:$true] %s210
          %213 = dma.hbm_to_vmem [thread:$0]  %s209, 64, %s211, %s198
        $region32: #{tpu_custom_call.1} parent=27 // pred_fallthru
          _
      $region28: #{tpu_custom_call.1} parent=5 // pred_fallthru
        _
      %p214 = scmp.le.s32.totalorder 1, %s17
      %p215 = scmp.lt.s32.totalorder %s17, 3
      %p216 = pnand %p214, %p215
      %p217 = pneg %p216
      // Predicated region
      $region33: #{tpu_custom_call.1} parent=5 // pred_check
        _
      $region34: #{tpu_custom_call.1} parent=5 // pred_check_branch
        %219 = sbr.rel (%p216) target = $region36
      $region35: #{tpu_custom_call.1} parent=5 // pred_region
        %s220 = ssub.s32 %s17, 1
        %s221 = sand.u32 %s44, 1
        %s222 = scalar_lea.sflag [#allocation6], %s221
        %s223 = sand.u32 %s44, 1
        %s224 = smul.addr %s223, 4
        %s225 = scalar_lea.vmem [#allocation5], %s224
        // Predicated region
        $region37: #{tpu_custom_call.1} parent=35 // pred_check
          %p226 = pneg %p57
        $region38: #{tpu_custom_call.1} parent=35 // pred_check_branch
          %228 = sbr.rel (%p226) target = $region40
        $region39: #{tpu_custom_call.1} parent=35 // pred_region
          %230 = dma.done %s222, 64
        $region40: #{tpu_custom_call.1} parent=35 // pred_fallthru
          _
        // Predicated region
        $region41: #{tpu_custom_call.1} parent=35 // pred_check
          %p231 = pneg %p78
        $region42: #{tpu_custom_call.1} parent=35 // pred_check_branch
          %233 = sbr.rel (%p231) target = $region44
        $region43: #{tpu_custom_call.1} parent=35 // pred_region
          %235 = dma.done [#allocation9], 2048
        $region44: #{tpu_custom_call.1} parent=35 // pred_fallthru
          _
        // Predicated region
        $region45: #{tpu_custom_call.1} parent=35 // pred_check
          %p236 = pneg %p99
        $region46: #{tpu_custom_call.1} parent=35 // pred_check_branch
          %238 = sbr.rel (%p236) target = $region48
        $region47: #{tpu_custom_call.1} parent=35 // pred_region
          %240 = dma.done [#allocation9], 32
        $region48: #{tpu_custom_call.1} parent=35 // pred_fallthru
          _
        %s241 = sand.u32 %s44, 1
        %s242 = scalar_lea.sflag [#allocation6], %s241
        %s243 = sand.u32 %s44, 1
        %s244 = smul.addr %s243, 4
        %s245 = scalar_lea.vmem [#allocation5], %s244
        %p246 = pneg %p57
        %p247 = pneg %p54
        %p248 = pneg %p78
        %p249 = pneg %p75
        %p250 = pneg %p99
        %p251 = pneg %p96
        %p252 = pneg %p120
        %p253 = pneg %p117
        %p254 = pneg %p146
        %p255 = pneg %p143
        %s256 = sand.u32 %s133, 1
        %s257 = scalar_lea.sflag [#allocation7], %s256
        %s258 = sand.u32 %s133, 1
        %s259 = scalar_lea.vmem [#allocation11], %s258
        %p262 = scmp.eq.s32.totalorder %s27, 0
        // Predicated region
        $region49: #{tpu_custom_call.1} parent=35 // pred_check
          %p263 = pneg %p262
        $region50: #{tpu_custom_call.1} parent=35 // pred_check_branch
          %265 = sbr.rel (%p263) target = $region52
        $region51: #{tpu_custom_call.1} parent=35 // pred_region
          %vm266 = vcmask 0
          %267 = vst.msk [vmem:[#allocation2] sm:$0x1] %vm266, -1e+30
          %268 = vst.msk [vmem:[#allocation3] sm:$0x1] %vm266, 0.0
          %269 = vst [vmem:[#allocation4] sm:$0x1] 0.0
        $region52: #{tpu_custom_call.1} parent=35 // pred_fallthru
          _
        %v270 = vld [vmem:[%s225] sm:$0xf]
        %v271 = vld [vmem:[#allocation8] sm:$0xff]
        %v272 = vld [vmem:[#allocation8 + $0x8] sm:$0xff]
        %v273 = vld [vmem:[#allocation8 + $0x10] sm:$0xff]
        %v274 = vld [vmem:[#allocation8 + $0x18] sm:$0xff]
        %v275 = vld [vmem:[#allocation8 + $0x20] sm:$0xff]
        %v276 = vld [vmem:[#allocation8 + $0x28] sm:$0xff]
        %v277 = vld [vmem:[#allocation8 + $0x30] sm:$0xff]
        %v278 = vld [vmem:[#allocation8 + $0x38] sm:$0xff]
        %v279 = vld [vmem:[#allocation8 + $0x40] sm:$0xff]
        %v280 = vld [vmem:[#allocation8 + $0x48] sm:$0xff]
        %v281 = vld [vmem:[#allocation8 + $0x50] sm:$0xff]
        %v282 = vld [vmem:[#allocation8 + $0x58] sm:$0xff]
        %v283 = vld [vmem:[#allocation8 + $0x60] sm:$0xff]
        %v284 = vld [vmem:[#allocation8 + $0x68] sm:$0xff]
        %v285 = vld [vmem:[#allocation8 + $0x70] sm:$0xff]
        %v286 = vld [vmem:[#allocation8 + $0x78] sm:$0xff]
        %v287 = vld [vmem:[#allocation10] sm:$0x3]
        %v289 = vperm.slane %v287, 0
        %v290 = vperm.slane %v287, 1
        %v309 = vunpack.c.l.b16 %v271
        %v310 = vunpack.c.h.b16 %v271
        %v311 = vunpack.c.l.b16 %v272
        %v312 = vunpack.c.h.b16 %v272
        %v313 = vunpack.c.l.b16 %v273
        %v314 = vunpack.c.h.b16 %v273
        %v315 = vunpack.c.l.b16 %v274
        %v316 = vunpack.c.h.b16 %v274
        %v317 = vunpack.c.l.b16 %v275
        %v318 = vunpack.c.h.b16 %v275
        %v319 = vunpack.c.l.b16 %v276
        %v320 = vunpack.c.h.b16 %v276
        %v321 = vunpack.c.l.b16 %v277
        %v322 = vunpack.c.h.b16 %v277
        %v323 = vunpack.c.l.b16 %v278
        %v324 = vunpack.c.h.b16 %v278
        %v325 = vunpack.c.l.b16 %v279
        %v326 = vunpack.c.h.b16 %v279
        %v327 = vunpack.c.l.b16 %v280
        %v328 = vunpack.c.h.b16 %v280
        %v329 = vunpack.c.l.b16 %v281
        %v330 = vunpack.c.h.b16 %v281
        %v331 = vunpack.c.l.b16 %v282
        %v332 = vunpack.c.h.b16 %v282
        %v333 = vunpack.c.l.b16 %v283
        %v334 = vunpack.c.h.b16 %v283
        %v335 = vunpack.c.l.b16 %v284
        %v336 = vunpack.c.h.b16 %v284
        %v337 = vunpack.c.l.b16 %v285
        %v338 = vunpack.c.h.b16 %v285
        %v339 = vunpack.c.l.b16 %v286
        %v340 = vunpack.c.h.b16 %v286
        %v341 = vpack.c.b16 %v311, %v309
        %v342 = vpack.c.b16 %v312, %v310
        %v343 = vpack.c.b16 %v315, %v313
        %v344 = vpack.c.b16 %v316, %v314
        %v345 = vpack.c.b16 %v319, %v317
        %v346 = vpack.c.b16 %v320, %v318
        %v347 = vpack.c.b16 %v323, %v321
        %v348 = vpack.c.b16 %v324, %v322
        %v349 = vpack.c.b16 %v327, %v325
        %v350 = vpack.c.b16 %v328, %v326
        %v351 = vpack.c.b16 %v331, %v329
        %v352 = vpack.c.b16 %v332, %v330
        %v353 = vpack.c.b16 %v335, %v333
        %v354 = vpack.c.b16 %v336, %v334
        %v355 = vpack.c.b16 %v339, %v337
        %v356 = vpack.c.b16 %v340, %v338
        %373 = vmatpush.bf16.msra.mxu0 %v355
        %374 = vmatpush.bf16.msra.mxu0 %v353
        %375 = vmatpush.bf16.msra.mxu0 %v351
        %376 = vmatpush.bf16.msra.mxu0 %v349
        %377 = vmatpush.bf16.msra.mxu0 %v347
        %378 = vmatpush.bf16.msra.mxu0 %v345
        %379 = vmatpush.bf16.msra.mxu0 %v343
        %380 = vmatpush.bf16.msra.mxu0 %v341
        %381 = vmatmul.bf16.gmra.mxu0 %v270
        %v382 = vpop.f32.mrf.mxu0
        %v383 = vadd.f32 %v289, %v382
        %v384 = vpop.f32.mrf.mxu0
        %385 = vdwg.mxu0
        %386 = vmatpush.bf16.msra.mxu0 %v356
        %387 = vmatpush.bf16.msra.mxu0 %v354
        %388 = vmatpush.bf16.msra.mxu0 %v352
        %389 = vmatpush.bf16.msra.mxu0 %v350
        %390 = vmatpush.bf16.msra.mxu0 %v348
        %391 = vmatpush.bf16.msra.mxu0 %v346
        %392 = vmatpush.bf16.msra.mxu0 %v344
        %393 = vmatpush.bf16.msra.mxu0 %v342
        %394 = vmatmul.bf16.gmra.mxu0 %v270
        %v395 = vpop.f32.mrf.mxu0
        %v396 = vadd.f32 %v290, %v395
        %v397 = vpop.f32.mrf.mxu0
        %398 = vdwg.mxu0
        %v399 = vpack.c.bf16 %v396, %v383
        %v400 = vunpack.c.l.bf16 %v399
        %v401 = vtanh.pop %v400
        %v402 = vpack.c.bf16 %v401, %v401
        %v404 = vrot.slane %v399, 4
        %v406 = vxor.u32 %v404, 2147516416
        %v407 = vunpack.c.l.bf16 %v406
        %v408 = vmul.f32 %v407, 1.442695
        %v409 = vpow.pop %v408
        %v410 = vpack.c.bf16 %v409, %v409
        %v411 = vunpack.c.l.bf16 %v410
        %v412 = vadd.f32 %v411, 1.0
        %v413 = vpack.c.bf16 %v412, %v412
        %v414 = vunpack.c.h.bf16 1065369472
        %v415 = vunpack.c.l.bf16 1065369472
        %v416 = vunpack.c.h.bf16 %v413
        %v417 = vunpack.c.l.bf16 %v413
        %v418 = vrcp.pop %v416
        %v419 = vmul.f32 %v414, %v418
        %v420 = vrcp.pop %v417
        %v421 = vmul.f32 %v415, %v420
        %v422 = vpack.c.bf16 %v419, %v421
        %v423 = vunpack.c.l.bf16 %v402
        %v424 = vunpack.c.l.bf16 %v422
        %v425 = vmul.f32 %v423, %v424
        %v426 = vpack.c.bf16 %v425, %v425
        %v427 = vld [vmem:[%s3] sm:$0x1]
        %428 = vmatpush.bf16.xpose.msra.mxu0 0
        %429 = vmatpush.bf16.xpose.msra.mxu0 0
        %430 = vmatpush.bf16.xpose.msra.mxu0 0
        %431 = vmatpush.bf16.xpose.msra.mxu0 0
        %432 = vmatpush.bf16.xpose.msra.mxu0 0
        %433 = vmatpush.bf16.xpose.msra.mxu0 0
        %434 = vmatpush.bf16.xpose.msra.mxu0 0
        %435 = vmatpush.bf16.xpose.msra.mxu0 %v426
        %436 = vmatmul.bf16.gmra.mxu0 %v427
        %v437 = vpop.f32.mrf.mxu0
        %v438 = vadd.f32 0.0, %v437
        %v439 = vpop.f32.mrf.mxu0
        %440 = vdwg.mxu0
        %v441 = vld [vmem:[#allocation2] sm:$0x1]
        %vm442 = vcmask 57344
        %v443 = vsel %vm442, %v438, -inf
        %444 = vmax.xlane.f32.xlu0 %v443
        %v445 = vpop.xlane.xlu0 %444
        %v446 = vmax.f32 %v441, %v445
        %v447 = vsub.f32 %v441, %v446
        %v448 = vmul.f32 %v447, 1.442695
        %v449 = vpow.pop %v448
        %451 = vset.pattern.permute.xlu0 0
        %452 = vperm.xlu0 %451, %v446
        %v453 = vpop.permute.xlu0 %452
        %v455 = vperm.slane %v453, 0
        %v456 = vsub.f32 %v438, %v455
        %v457 = vmul.f32 %v456, 1.442695
        %v458 = vpow.pop %v457
        %v459 = vld [vmem:[#allocation3] sm:$0x1]
        %v460 = vmul.f32 %v449, %v459
        %v461 = vsel %vm442, %v458, 0.0
        %462 = vadd.xlane.f32.xlu0 %v461
        %v463 = vpop.xlane.xlu0 %462
        %v464 = vadd.f32 %v460, %v463
        %vm465 = vcmask 0
        %466 = vst.msk [vmem:[#allocation3] sm:$0x1] %vm465, %v464
        %v467 = vld [vmem:[#allocation4] sm:$0x1]
        %469 = vset.pattern.permute.xlu0 0
        %470 = vperm.xlu0 %469, %v449
        %v471 = vpop.permute.xlu0 %470
        %v473 = vperm.slane %v471, 0
        %v474 = vmul.f32 %v473, %v467
        %v475 = vpack.c.bf16 %v458, %v458
        %vm476 = vcmask 64512
        %v478 = vsel %vm476, %v475, 0
        %vm480 = vcmask 1043456
        %v482 = vsel %vm480, %v270, 0
        %484 = vmatpush.bf16.msra.mxu0 0
        %485 = vmatpush.bf16.msra.mxu0 0
        %486 = vmatpush.bf16.msra.mxu0 0
        %487 = vmatpush.bf16.msra.mxu0 0
        %488 = vmatpush.bf16.msra.mxu0 0
        %489 = vmatpush.bf16.msra.mxu0 0
        %490 = vmatpush.bf16.msra.mxu0 0
        %491 = vmatpush.bf16.msra.mxu0 %v482
        %492 = vmatmul.bf16.gmra.mxu0 %v478
        %v493 = vpop.f32.mrf.mxu0
        %v494 = vadd.f32 0.0, %v493
        %v495 = vpop.f32.mrf.mxu0
        %496 = vdwg.mxu0
        %v497 = vadd.f32 %v474, %v494
        %498 = vst [vmem:[#allocation4] sm:$0x1] %v497
        %499 = vst.msk [vmem:[#allocation2] sm:$0x1] %vm465, %v446
        // Predicated region
        $region53: #{tpu_custom_call.1} parent=35 // pred_check
          %p500 = pneg %p262
        $region54: #{tpu_custom_call.1} parent=35 // pred_check_branch
          %502 = sbr.rel (%p500) target = $region56
        $region55: #{tpu_custom_call.1} parent=35 // pred_region
          %v503 = vld [vmem:[#allocation4] sm:$0x1]
          %v504 = vld [vmem:[#allocation3] sm:$0x1]
          %v505 = vrcp.pop %v504
          %507 = vset.pattern.permute.xlu0 0
          %508 = vperm.xlu0 %507, %v505
          %v509 = vpop.permute.xlu0 %508
          %v511 = vperm.slane %v509, 0
          %v512 = vmul.f32 %v503, %v511
          %513 = vst [vmem:[%s259] sm:$0x1] %v512
        $region56: #{tpu_custom_call.1} parent=35 // pred_fallthru
          _
        %s514 = sand.u32 %s133, 1
        %s515 = scalar_lea.sflag [#allocation7], %s514
        %s516 = sand.u32 %s133, 1
        %s517 = scalar_lea.vmem [#allocation11], %s516
        // Predicated region
        $region57: #{tpu_custom_call.1} parent=35 // pred_check
          %p518 = pneg %p143
        $region58: #{tpu_custom_call.1} parent=35 // pred_check_branch
          %520 = sbr.rel (%p518) target = $region60
        $region59: #{tpu_custom_call.1} parent=35 // pred_region
          %522 = vsyncadd %s515, 0
          %s523 = scalar_lea.hbm %s4, %s26
          %s525 = sshll.u32 %s517, 4
          %s526 = int_to_ptr.vmem [resolvable:$true] %s525
          %s527 = sshll.u32 %s523, 4
          %s528 = int_to_ptr.hbm [resolvable:$true] %s527
          %530 = dma.vmem_to_hbm [thread:$0]  %s526, 16, %s528, %s515
        $region60: #{tpu_custom_call.1} parent=35 // pred_fallthru
          _
      $region36: #{tpu_custom_call.1} parent=5 // pred_fallthru
        _
      %p531 = scmp.le.s32.totalorder 2, %s17
      // Predicated region
      $region61: #{tpu_custom_call.1} parent=5 // pred_check
        %p532 = pneg %p531
      $region62: #{tpu_custom_call.1} parent=5 // pred_check_branch
        %534 = sbr.rel (%p532) target = $region64
      $region63: #{tpu_custom_call.1} parent=5 // pred_region
        %s535 = ssub.s32 %s17, 2
        // Predicated region
        $region65: #{tpu_custom_call.1} parent=63 // pred_check
          %p536 = pneg %p149
        $region66: #{tpu_custom_call.1} parent=63 // pred_check_branch
          %538 = sbr.rel (%p536) target = $region68
        $region67: #{tpu_custom_call.1} parent=63 // pred_region
          %s539 = sand.u32 %s134, 1
          %s540 = scalar_lea.sflag [#allocation7], %s539
          %s541 = sand.u32 %s134, 1
          %s542 = scalar_lea.vmem [#allocation11], %s541
          %544 = dma.done %s540, 16
        $region68: #{tpu_custom_call.1} parent=63 // pred_fallthru
          _
      $region64: #{tpu_custom_call.1} parent=5 // pred_fallthru
        _
    $region6: #{tpu_custom_call.1} parent=1 // loop_footer
      %s21 = sadd.s32 1, %s17
    $region7: #{tpu_custom_call.1} parent=1 // loop_footer_branch
      %16 = sbr.rel target = $region3
    $region8: #{tpu_custom_call.1} parent=1 // loop_exit
      _
    %545 = vsyncpa [#allocation6], 1
    %s546 = scalar_lea.sflag [#allocation6], 1
    %547 = vsyncpa %s546, 1
    %548 = vsyncpa [#allocation9], 1
    %549 = vsyncpa [#allocation7], 1
    %s550 = scalar_lea.sflag [#allocation7], 1
    %551 = vsyncpa %s550, 1

</llo_original>
